<compile_context>
chip_gen: v5e
topology: v5e:2x2
jax: 0.10.0
libtpu: 0.0.40
codegen_flags: <defaults>
</compile_context>

<pallas_src>
import functools

import jax
import jax.numpy as jnp
import numpy as np
from jax import lax
from jax.experimental import pallas as pl
from jax.experimental.pallas import tpu as pltpu


# ------------------------------ Pallas kernel -------------------------------

def _basic_block_kernel(x_ref, w1_ref, b1_ref, w2_ref, b2_ref, o_ref, *,
                        rows_per_image, mxu_dtype):
    """Fused BasicBlock forward (stride=1, inplanes == planes).

    Row layout: activations are (R, W*C) with R = N*H image rows stacked along
    the sublane axis and (x, channel) flattened along the lane axis.

    x_ref : (R, W*Ci)        input rows (residual), f32
    w1_ref: (3, W*Ci, W*Cm)  conv1 weights, block-Toeplitz over W, BN1 folded
    b1_ref: (1, W*Cm)        folded BN1 bias tiled over W, f32
    w2_ref: (3, W*Cm, W*Co)  conv2 weights, block-Toeplitz over W, BN2 folded
    b2_ref: (1, W*Co)        folded BN2 bias tiled over W, f32
    o_ref : (R, W*Co)        output rows
    """
    R = x_ref.shape[0]
    num_images = R // rows_per_image

    x = x_ref[...].astype(jnp.float32)                        # residual kept f32

    # Row-validity masks for the dy = 0 / dy = 2 taps (the rolled row would
    # otherwise wrap across image boundaries).  Comparisons only.
    row = lax.broadcasted_iota(jnp.int32, (R, 1), 0)
    first_row = row == 0
    last_row = row == rows_per_image - 1
    for n in range(1, num_images):
        first_row = jnp.logical_or(first_row, row == n * rows_per_image)
        last_row = jnp.logical_or(last_row,
                                  row == (n + 1) * rows_per_image - 1)
    has_row_above = jnp.logical_not(first_row)                 # valid for dy = 0
    has_row_below = jnp.logical_not(last_row)                  # valid for dy = 2

    def conv3x3(p, w_ref, b_ref):
        """3x3 conv + folded-BN bias. p: (R, W*Cin) f32 -> (R, W*Cout) f32."""
        n_out = w_ref.shape[2]
        # Bias folded into the accumulator init (one broadcast per conv).
        acc = jnp.broadcast_to(b_ref[...], (R, n_out)).astype(jnp.float32)
        for dy in range(3):
            shift = (1 - dy) % R                               # +1, 0, -1 (mod R)
            tap = p if shift == 0 else pltpu.roll(p, shift=shift, axis=0)
            if dy == 0:
                tap = jnp.where(has_row_above, tap, 0.0)
            elif dy == 2:
                tap = jnp.where(has_row_below, tap, 0.0)
            # The dx taps + W zero padding live in the block-Toeplitz weight.
            acc = acc + jnp.dot(tap.astype(mxu_dtype), w_ref[dy],
                                preferred_element_type=jnp.float32)
        return acc

    h = jnp.maximum(conv3x3(x, w1_ref, b1_ref), 0.0)           # stays in VMEM
    y = conv3x3(h, w2_ref, b2_ref) + x                          # residual, f32
    o_ref[...] = jnp.maximum(y, 0.0).astype(o_ref.dtype)


# ------------------------------ host wrappers --------------------------------

def _fold_bn(gamma, beta, mean, var, eps=1e-5):
    scale = gamma / jnp.sqrt(var + eps)
    bias = beta - mean * scale
    return scale, bias


def _toeplitz_weight(w_oihw, scale, width, dtype):
    """(Cout, Cin, 3, 3) conv weight (with BN scale folded in) ->
    (3, W*Cin, W*Cout) block-Toeplitz matrices: the dy-tap matrix maps an input
    row (x_in, ci) to an output row (x_out, co), encoding the three dx taps and
    the zero padding along W.  One-time host-side weight prep."""
    w = (np.asarray(w_oihw, np.float32)
         * np.asarray(scale, np.float32)[:, None, None, None])
    co, ci = w.shape[0], w.shape[1]
    w = np.transpose(w, (2, 3, 1, 0))                          # (dy, dx, ci, co)
    t = np.zeros((3, width * ci, width * co), np.float32)
    for dy in range(3):
        for dx in range(3):
            for xo in range(width):
                xi = xo + dx - 1
                if 0 <= xi < width:
                    t[dy, xi * ci:(xi + 1) * ci,
                      xo * co:(xo + 1) * co] = w[dy, dx]
    return jnp.asarray(t, dtype=dtype)


def basic_block_forward_nhwc(x_nhwc, params, mxu_dtype=jnp.bfloat16):
    """Fused BasicBlock forward (stride=1, downsample=None). NHWC in/out."""
    N, H, W, Ci = x_nhwc.shape
    Cm = params["conv1_w"].shape[0]
    Co = params["conv2_w"].shape[0]
    assert Ci == Co and params["conv2_w"].shape[1] == Cm, \
        "stride=1 BasicBlock with no downsample requires inplanes == planes"

    s1, b1 = _fold_bn(params["bn1_gamma"], params["bn1_beta"],
                      params["bn1_mean"], params["bn1_var"])
    s2, b2 = _fold_bn(params["bn2_gamma"], params["bn2_beta"],
                      params["bn2_mean"], params["bn2_var"])

    w1 = _toeplitz_weight(params["conv1_w"], s1, W, mxu_dtype)  # (3, W*Ci, W*Cm)
    w2 = _toeplitz_weight(params["conv2_w"], s2, W, mxu_dtype)  # (3, W*Cm, W*Co)
    b1t = jnp.tile(b1, W).reshape(1, W * Cm).astype(jnp.float32)
    b2t = jnp.tile(b2, W).reshape(1, W * Co).astype(jnp.float32)

    R = N * H
    x_rows = x_nhwc.reshape(R, W * Ci)     # pure reshape (trailing dims merge)

    kernel = functools.partial(_basic_block_kernel,
                               rows_per_image=H, mxu_dtype=mxu_dtype)

    out_rows = pl.pallas_call(
        kernel,
        out_shape=jax.ShapeDtypeStruct((R, W * Co), x_nhwc.dtype),
        grid=(1,),
        in_specs=[
            pl.BlockSpec((R, W * Ci), lambda i: (0, 0)),
            pl.BlockSpec((3, W * Ci, W * Cm), lambda i: (0, 0, 0)),
            pl.BlockSpec((1, W * Cm), lambda i: (0, 0)),
            pl.BlockSpec((3, W * Cm, W * Co), lambda i: (0, 0, 0)),
            pl.BlockSpec((1, W * Co), lambda i: (0, 0)),
        ],
        out_specs=pl.BlockSpec((R, W * Co), lambda i: (0, 0)),
        compiler_params=pltpu.CompilerParams(
            dimension_semantics=("arbitrary",),
            vmem_limit_bytes=32 * 1024 * 1024,
        ),
    )(x_rows, w1, b1t, w2, b2t)

    return out_rows.reshape(N, H, W, Co)


def basic_block_forward(x_nchw, params, mxu_dtype=jnp.bfloat16):
    """NCHW adapter matching the PyTorch module interface.  A full NHWC network
    should call basic_block_forward_nhwc directly and skip these transposes."""
    x = jnp.transpose(x_nchw, (0, 2, 3, 1))                    # NCHW -> NHWC
    out = basic_block_forward_nhwc(x, params, mxu_dtype=mxu_dtype)
    return jnp.transpose(out, (0, 3, 1, 2))                    # NHWC -> NCHW


# ------------------------------ reference (JAX) ------------------------------

def basic_block_reference(x_nchw, params):
    def conv(x, w):
        return lax.conv_general_dilated(
            x, w, window_strides=(1, 1), padding=((1, 1), (1, 1)),
            dimension_numbers=("NCHW", "OIHW", "NCHW"))

    def bn(x, g, b, m, v, eps=1e-5):
        g, b, m, v = (a.reshape(1, -1, 1, 1) for a in (g, b, m, v))
        return g * (x - m) / jnp.sqrt(v + eps) + b

    out = conv(x_nchw, params["conv1_w"])
    out = bn(out, params["bn1_gamma"], params["bn1_beta"],
             params["bn1_mean"], params["bn1_var"])
    out = jnp.maximum(out, 0.0)
    out = conv(out, params["conv2_w"])
    out = bn(out, params["bn2_gamma"], params["bn2_beta"],
             params["bn2_mean"], params["bn2_var"])
    out = out + x_nchw
    return jnp.maximum(out, 0.0)


# ----------------------------------- main ------------------------------------

if __name__ == "__main__":
    N, C, H, W = 2, 4, 16, 16          # inplanes == planes, stride=1, no downsample
    key = jax.random.PRNGKey(0)
    ks = jax.random.split(key, 9)

    params = {
        "conv1_w":   0.1 * jax.random.normal(ks[0], (C, C, 3, 3), jnp.float32),
        "conv2_w":   0.1 * jax.random.normal(ks[1], (C, C, 3, 3), jnp.float32),
        "bn1_gamma": 1.0 + 0.1 * jax.random.normal(ks[2], (C,), jnp.float32),
        "bn1_beta":  0.1 * jax.random.normal(ks[3], (C,), jnp.float32),
        "bn1_mean":  0.05 * jax.random.normal(ks[4], (C,), jnp.float32),
        "bn1_var":   jnp.abs(1.0 + 0.1 * jax.random.normal(ks[5], (C,), jnp.float32)),
        "bn2_gamma": 1.0 + 0.1 * jax.random.normal(ks[6], (C,), jnp.float32),
        "bn2_beta":  0.1 * jax.random.normal(ks[7], (C,), jnp.float32),
        "bn2_mean":  jnp.zeros((C,), jnp.float32),
        "bn2_var":   jnp.ones((C,), jnp.float32),
    }

    x = jax.random.normal(ks[8], (N, C, H, W), jnp.float32)
    ref = basic_block_reference(x, params)

    # Structural / numerical check with f32 MXU operands (tight tolerance).
    out_f32 = jax.block_until_ready(
        basic_block_forward(x, params, mxu_dtype=jnp.float32))
    assert out_f32.shape == (N, C, H, W)
    assert jnp.allclose(out_f32, ref, atol=1e-4, rtol=1e-4), \
        "f32 path mismatch vs reference"

    # Production path: bf16 MXU operands, f32 accumulation/epilogue
    # (looser tolerance purely from bf16 operand rounding).
    out_bf16 = jax.block_until_ready(
        basic_block_forward(x, params, mxu_dtype=jnp.bfloat16))
    assert out_bf16.shape == (N, C, H, W)
    assert jnp.allclose(out_bf16, ref, atol=3e-2, rtol=3e-2), \
        "bf16-MXU path mismatch vs reference"

    print("KERNEL_OK")
</pallas_src>

<mosaic_0001>
module attributes {stable_mosaic.version = 11 : i64} {
  func.func @_basic_block_kernel(%arg0: i32, %arg1: memref<32x64xf32, #tpu.memory_space<vmem>>, %arg2: memref<3x64x64xf32, #tpu.memory_space<vmem>>, %arg3: memref<1x64xf32, #tpu.memory_space<vmem>>, %arg4: memref<3x64x64xf32, #tpu.memory_space<vmem>>, %arg5: memref<1x64xf32, #tpu.memory_space<vmem>>, %arg6: memref<32x64xf32, #tpu.memory_space<vmem>>) attributes {dimension_semantics = [#tpu.dimension_semantics<arbitrary>], iteration_bounds = array<i64: 1>, scalar_prefetch = 0 : i64, scratch_operands = 0 : i64, tpu.core_type = #tpu.core_type<tc>, window_params = [{pipeline_mode = #tpu.pipeline_mode<synchronous>, transform_indices = @transform_0, window_bounds = array<i64: 32, 64>}, {pipeline_mode = #tpu.pipeline_mode<synchronous>, transform_indices = @transform_1, window_bounds = array<i64: 3, 64, 64>}, {pipeline_mode = #tpu.pipeline_mode<synchronous>, transform_indices = @transform_2, window_bounds = array<i64: 1, 64>}, {pipeline_mode = #tpu.pipeline_mode<synchronous>, transform_indices = @transform_3, window_bounds = array<i64: 3, 64, 64>}, {pipeline_mode = #tpu.pipeline_mode<synchronous>, transform_indices = @transform_4, window_bounds = array<i64: 1, 64>}, {pipeline_mode = #tpu.pipeline_mode<synchronous>, transform_indices = @transform_5, window_bounds = array<i64: 32, 64>}]} {
    %c0 = arith.constant 0 : index
    %c0_0 = arith.constant 0 : index
    %0 = vector.load %arg1[%c0, %c0_0] : memref<32x64xf32, #tpu.memory_space<vmem>>, vector<32x64xf32>
    %1 = tpu.iota {dimensions = array<i32: 0>} : vector<32x1xi32>
    %c0_i32 = arith.constant 0 : i32
    %2 = vector.broadcast %c0_i32 : i32 to vector<32x1xi32>
    %3 = arith.cmpi eq, %1, %2 : vector<32x1xi32>
    %c15_i32 = arith.constant 15 : i32
    %4 = vector.broadcast %c15_i32 : i32 to vector<32x1xi32>
    %5 = arith.cmpi eq, %1, %4 : vector<32x1xi32>
    %c16_i32 = arith.constant 16 : i32
    %6 = vector.broadcast %c16_i32 : i32 to vector<32x1xi32>
    %7 = arith.cmpi eq, %1, %6 : vector<32x1xi32>
    %8 = arith.ori %3, %7 : vector<32x1xi1>
    %c31_i32 = arith.constant 31 : i32
    %9 = vector.broadcast %c31_i32 : i32 to vector<32x1xi32>
    %10 = arith.cmpi eq, %1, %9 : vector<32x1xi32>
    %11 = arith.ori %5, %10 : vector<32x1xi1>
    %cst = arith.constant dense<true> : vector<32x1xi1>
    %12 = arith.xori %8, %cst : vector<32x1xi1>
    %cst_1 = arith.constant dense<true> : vector<32x1xi1>
    %13 = arith.xori %11, %cst_1 : vector<32x1xi1>
    %c0_2 = arith.constant 0 : index
    %c0_3 = arith.constant 0 : index
    %14 = vector.load %arg3[%c0_2, %c0_3] : memref<1x64xf32, #tpu.memory_space<vmem>>, vector<1x64xf32>
    %15 = vector.shape_cast %14 : vector<1x64xf32> to vector<1x64xf32>
    %16 = vector.broadcast %15 : vector<1x64xf32> to vector<32x64xf32>
    %c1_i32 = arith.constant 1 : i32
    %17 = tpu.dynamic_rotate %0 by %c1_i32 dim 0 : vector<32x64xf32>, i32 -> vector<32x64xf32>
    %cst_4 = arith.constant 0.000000e+00 : f32
    %18 = vector.shape_cast %12 : vector<32x1xi1> to vector<32x1xi1>
    %19 = vector.broadcast %18 : vector<32x1xi1> to vector<32x64xi1>
    %20 = vector.broadcast %cst_4 : f32 to vector<32x64xf32>
    %21 = arith.select %19, %17, %20 : vector<32x64xi1>, vector<32x64xf32>
    %c0_5 = arith.constant 0 : index
    %c0_6 = arith.constant 0 : index
    %c0_7 = arith.constant 0 : index
    %22 = vector.load %arg2[%c0_5, %c0_6, %c0_7] : memref<3x64x64xf32, #tpu.memory_space<vmem>>, vector<1x64x64xf32>
    %23 = vector.shape_cast %22 : vector<1x64x64xf32> to vector<64x64xf32>
    %cst_8 = arith.constant dense<0.000000e+00> : vector<32x64xf32>
    %24 = tpu.matmul %21, %23, %cst_8 {dimension_numbers = #tpu.dot_dimension_numbers<[1], [0], [0], [1], [0, 0, 1, 1], [], []>} : vector<32x64xf32>, vector<64x64xf32>, vector<32x64xf32> -> vector<32x64xf32>
    %25 = arith.addf %16, %24 : vector<32x64xf32>
    %c1 = arith.constant 1 : index
    %c0_9 = arith.constant 0 : index
    %c0_10 = arith.constant 0 : index
    %26 = vector.load %arg2[%c1, %c0_9, %c0_10] : memref<3x64x64xf32, #tpu.memory_space<vmem>>, vector<1x64x64xf32>
    %27 = vector.shape_cast %26 : vector<1x64x64xf32> to vector<64x64xf32>
    %cst_11 = arith.constant dense<0.000000e+00> : vector<32x64xf32>
    %28 = tpu.matmul %0, %27, %cst_11 {dimension_numbers = #tpu.dot_dimension_numbers<[1], [0], [0], [1], [0, 0, 1, 1], [], []>} : vector<32x64xf32>, vector<64x64xf32>, vector<32x64xf32> -> vector<32x64xf32>
    %29 = arith.addf %25, %28 : vector<32x64xf32>
    %c31_i32_12 = arith.constant 31 : i32
    %30 = tpu.dynamic_rotate %0 by %c31_i32_12 dim 0 : vector<32x64xf32>, i32 -> vector<32x64xf32>
    %cst_13 = arith.constant 0.000000e+00 : f32
    %31 = vector.shape_cast %13 : vector<32x1xi1> to vector<32x1xi1>
    %32 = vector.broadcast %31 : vector<32x1xi1> to vector<32x64xi1>
    %33 = vector.broadcast %cst_13 : f32 to vector<32x64xf32>
    %34 = arith.select %32, %30, %33 : vector<32x64xi1>, vector<32x64xf32>
    %c2 = arith.constant 2 : index
    %c0_14 = arith.constant 0 : index
    %c0_15 = arith.constant 0 : index
    %35 = vector.load %arg2[%c2, %c0_14, %c0_15] : memref<3x64x64xf32, #tpu.memory_space<vmem>>, vector<1x64x64xf32>
    %36 = vector.shape_cast %35 : vector<1x64x64xf32> to vector<64x64xf32>
    %cst_16 = arith.constant dense<0.000000e+00> : vector<32x64xf32>
    %37 = tpu.matmul %34, %36, %cst_16 {dimension_numbers = #tpu.dot_dimension_numbers<[1], [0], [0], [1], [0, 0, 1, 1], [], []>} : vector<32x64xf32>, vector<64x64xf32>, vector<32x64xf32> -> vector<32x64xf32>
    %38 = arith.addf %29, %37 : vector<32x64xf32>
    %cst_17 = arith.constant 0.000000e+00 : f32
    %39 = vector.broadcast %cst_17 : f32 to vector<32x64xf32>
    %40 = arith.maximumf %38, %39 : vector<32x64xf32>
    %c0_18 = arith.constant 0 : index
    %c0_19 = arith.constant 0 : index
    %41 = vector.load %arg5[%c0_18, %c0_19] : memref<1x64xf32, #tpu.memory_space<vmem>>, vector<1x64xf32>
    %42 = vector.shape_cast %41 : vector<1x64xf32> to vector<1x64xf32>
    %43 = vector.broadcast %42 : vector<1x64xf32> to vector<32x64xf32>
    %c1_i32_20 = arith.constant 1 : i32
    %44 = tpu.dynamic_rotate %40 by %c1_i32_20 dim 0 : vector<32x64xf32>, i32 -> vector<32x64xf32>
    %cst_21 = arith.constant 0.000000e+00 : f32
    %45 = vector.shape_cast %12 : vector<32x1xi1> to vector<32x1xi1>
    %46 = vector.broadcast %45 : vector<32x1xi1> to vector<32x64xi1>
    %47 = vector.broadcast %cst_21 : f32 to vector<32x64xf32>
    %48 = arith.select %46, %44, %47 : vector<32x64xi1>, vector<32x64xf32>
    %c0_22 = arith.constant 0 : index
    %c0_23 = arith.constant 0 : index
    %c0_24 = arith.constant 0 : index
    %49 = vector.load %arg4[%c0_22, %c0_23, %c0_24] : memref<3x64x64xf32, #tpu.memory_space<vmem>>, vector<1x64x64xf32>
    %50 = vector.shape_cast %49 : vector<1x64x64xf32> to vector<64x64xf32>
    %cst_25 = arith.constant dense<0.000000e+00> : vector<32x64xf32>
    %51 = tpu.matmul %48, %50, %cst_25 {dimension_numbers = #tpu.dot_dimension_numbers<[1], [0], [0], [1], [0, 0, 1, 1], [], []>} : vector<32x64xf32>, vector<64x64xf32>, vector<32x64xf32> -> vector<32x64xf32>
    %52 = arith.addf %43, %51 : vector<32x64xf32>
    %c1_26 = arith.constant 1 : index
    %c0_27 = arith.constant 0 : index
    %c0_28 = arith.constant 0 : index
    %53 = vector.load %arg4[%c1_26, %c0_27, %c0_28] : memref<3x64x64xf32, #tpu.memory_space<vmem>>, vector<1x64x64xf32>
    %54 = vector.shape_cast %53 : vector<1x64x64xf32> to vector<64x64xf32>
    %cst_29 = arith.constant dense<0.000000e+00> : vector<32x64xf32>
    %55 = tpu.matmul %40, %54, %cst_29 {dimension_numbers = #tpu.dot_dimension_numbers<[1], [0], [0], [1], [0, 0, 1, 1], [], []>} : vector<32x64xf32>, vector<64x64xf32>, vector<32x64xf32> -> vector<32x64xf32>
    %56 = arith.addf %52, %55 : vector<32x64xf32>
    %c31_i32_30 = arith.constant 31 : i32
    %57 = tpu.dynamic_rotate %40 by %c31_i32_30 dim 0 : vector<32x64xf32>, i32 -> vector<32x64xf32>
    %cst_31 = arith.constant 0.000000e+00 : f32
    %58 = vector.shape_cast %13 : vector<32x1xi1> to vector<32x1xi1>
    %59 = vector.broadcast %58 : vector<32x1xi1> to vector<32x64xi1>
    %60 = vector.broadcast %cst_31 : f32 to vector<32x64xf32>
    %61 = arith.select %59, %57, %60 : vector<32x64xi1>, vector<32x64xf32>
    %c2_32 = arith.constant 2 : index
    %c0_33 = arith.constant 0 : index
    %c0_34 = arith.constant 0 : index
    %62 = vector.load %arg4[%c2_32, %c0_33, %c0_34] : memref<3x64x64xf32, #tpu.memory_space<vmem>>, vector<1x64x64xf32>
    %63 = vector.shape_cast %62 : vector<1x64x64xf32> to vector<64x64xf32>
    %cst_35 = arith.constant dense<0.000000e+00> : vector<32x64xf32>
    %64 = tpu.matmul %61, %63, %cst_35 {dimension_numbers = #tpu.dot_dimension_numbers<[1], [0], [0], [1], [0, 0, 1, 1], [], []>} : vector<32x64xf32>, vector<64x64xf32>, vector<32x64xf32> -> vector<32x64xf32>
    %65 = arith.addf %56, %64 : vector<32x64xf32>
    %66 = arith.addf %65, %0 : vector<32x64xf32>
    %cst_36 = arith.constant 0.000000e+00 : f32
    %67 = vector.broadcast %cst_36 : f32 to vector<32x64xf32>
    %68 = arith.maximumf %66, %67 : vector<32x64xf32>
    %c0_37 = arith.constant 0 : index
    %c0_38 = arith.constant 0 : index
    %69 = vector.load %arg6[%c0_37, %c0_38] : memref<32x64xf32, #tpu.memory_space<vmem>>, vector<32x64xf32>
    tpu.vector_store %arg6[%c0_37, %c0_38], %68 {strides = array<i32>} : memref<32x64xf32, #tpu.memory_space<vmem>>, vector<32x64xf32>,
    return
  }
  func.func @transform_0(%arg0: i32) -> (i32, i32) {
    %c0_i32 = arith.constant 0 : i32
    %c0_i32_0 = arith.constant 0 : i32
    %c0_i32_1 = arith.constant 0 : i32
    return %c0_i32, %c0_i32_0 : i32, i32
  }
  func.func @transform_1(%arg0: i32) -> (i32, i32, i32) {
    %c0_i32 = arith.constant 0 : i32
    %c0_i32_0 = arith.constant 0 : i32
    %c0_i32_1 = arith.constant 0 : i32
    %c0_i32_2 = arith.constant 0 : i32
    return %c0_i32, %c0_i32_0, %c0_i32_1 : i32, i32, i32
  }
  func.func @transform_2(%arg0: i32) -> (i32, i32) {
    %c0_i32 = arith.constant 0 : i32
    %c0_i32_0 = arith.constant 0 : i32
    %c0_i32_1 = arith.constant 0 : i32
    return %c0_i32, %c0_i32_0 : i32, i32
  }
  func.func @transform_3(%arg0: i32) -> (i32, i32, i32) {
    %c0_i32 = arith.constant 0 : i32
    %c0_i32_0 = arith.constant 0 : i32
    %c0_i32_1 = arith.constant 0 : i32
    %c0_i32_2 = arith.constant 0 : i32
    return %c0_i32, %c0_i32_0, %c0_i32_1 : i32, i32, i32
  }
  func.func @transform_4(%arg0: i32) -> (i32, i32) {
    %c0_i32 = arith.constant 0 : i32
    %c0_i32_0 = arith.constant 0 : i32
    %c0_i32_1 = arith.constant 0 : i32
    return %c0_i32, %c0_i32_0 : i32, i32
  }
  func.func @transform_5(%arg0: i32) -> (i32, i32) {
    %c0_i32 = arith.constant 0 : i32
    %c0_i32_0 = arith.constant 0 : i32
    %c0_i32_1 = arith.constant 0 : i32
    return %c0_i32, %c0_i32_0 : i32, i32
  }
}

</mosaic_0001>

<llo_original>
// kernel: tpu_custom_call.1
$region0: #{tpu_custom_call.1}
  #allocation0 [shape = 'u32[]', space=smem, size = 0x4, offset = 0x4, fixed_abs, tag = 'smem constant byte address 0x4 - core index']
  #allocation1 [shape = 'u32[72,128]{1,0:T(1,128)}', space=vmem, size = 0x9000, scoped, tag = 'internal scratch']
  %s0 = inlined_call_operand.hbm [shape: f32[32,64], index: 0, kind: input, shape index: {}]
  %s1 = inlined_call_operand.hbm [shape: f32[3,64,64], index: 1, kind: input, shape index: {}]
  %s2 = inlined_call_operand.vmem [shape: f32[1,64], index: 2, kind: input, shape index: {}]
  %s3 = inlined_call_operand.hbm [shape: f32[3,64,64], index: 3, kind: input, shape index: {}]
  %s4 = inlined_call_operand.vmem [shape: f32[1,64], index: 4, kind: input, shape index: {}]
  %s5 = inlined_call_operand.hbm [shape: f32[32,64], index: 5, kind: output, shape index: {}]
  %s6 = sld [smem:[#allocation0]]
  $region42: #{tpu_custom_call.1} parent=0
    _
  %s8 = ssub.s32 1, %s6
  %s9 = scalar_select 0, %s8, %s6
  $region1: #{tpu_custom_call.1} parent=0
    #allocation2 [shape = 'u8[16384]{0}', space=vmem, size = 0x4000, scoped, tag = 'input window, operand 0, single buffered']
    #allocation3 [shape = 's32[1]{0}', space=sflag, size = 0x4, scoped, tag = 'scoped memory for tpu_custom_call.1']
    #allocation4 [shape = 's32[1]{0}', space=sflag, size = 0x4, scoped, tag = 'scoped memory for tpu_custom_call.1']
    #allocation5 [shape = 'u8[98304]{0}', space=vmem, size = 0x18000, scoped, tag = 'input window, operand 1, single buffered']
    #allocation6 [shape = 's32[1]{0}', space=sflag, size = 0x4, scoped, tag = 'scoped memory for tpu_custom_call.1']
    #allocation7 [shape = 'u8[98304]{0}', space=vmem, size = 0x18000, scoped, tag = 'input window, operand 3, single buffered']
    #allocation8 [shape = 'u8[16384]{0}', space=vmem, size = 0x4000, scoped, tag = 'output window, operand 0, single buffered']
    %10 = vsyncpa [#allocation3], 0
    %11 = vsyncpa [#allocation6], 0
    %12 = vsyncpa [#allocation4], 0
    // Predicated region
    $region2: #{tpu_custom_call.1} parent=1 // pred_check
      _
    $region3: #{tpu_custom_call.1} parent=1 // pred_check_branch
      %14 = sbr.rel (0) target = $region5
    $region4: #{tpu_custom_call.1} parent=1 // pred_region
      %16 = vsyncadd [#allocation3], 0
      %s17 = sshll.u32 %s0, 4
      %s18 = int_to_ptr.hbm [resolvable:$true] %s17
      %s19 = sshll.u32 [#allocation2], 4
      %s20 = int_to_ptr.vmem [resolvable:$true] %s19
      %25 = dma.hbm_to_vmem [thread:$0]  %s18, 512, %s20, [#allocation3], 128, 128, 8
    $region5: #{tpu_custom_call.1} parent=1 // pred_fallthru
      _
    // Predicated region
    $region6: #{tpu_custom_call.1} parent=1 // pred_check
      _
    $region7: #{tpu_custom_call.1} parent=1 // pred_check_branch
      %27 = sbr.rel (0) target = $region9
    $region8: #{tpu_custom_call.1} parent=1 // pred_region
      %29 = vsyncadd [#allocation6], 0
      %s30 = sshll.u32 %s1, 4
      %s31 = int_to_ptr.hbm [resolvable:$true] %s30
      %s32 = sshll.u32 [#allocation5], 4
      %s33 = int_to_ptr.vmem [resolvable:$true] %s32
      %38 = dma.hbm_to_vmem [thread:$0]  %s31, 3072, %s33, [#allocation6], 128, 128, 8
    $region9: #{tpu_custom_call.1} parent=1 // pred_fallthru
      _
    // Predicated region
    $region10: #{tpu_custom_call.1} parent=1 // pred_check
      _
    $region11: #{tpu_custom_call.1} parent=1 // pred_check_branch
      %40 = sbr.rel (0) target = $region13
    $region12: #{tpu_custom_call.1} parent=1 // pred_region
      _
    $region13: #{tpu_custom_call.1} parent=1 // pred_fallthru
      _
    // Predicated region
    $region14: #{tpu_custom_call.1} parent=1 // pred_check
      _
    $region15: #{tpu_custom_call.1} parent=1 // pred_check_branch
      %42 = sbr.rel (0) target = $region17
    $region16: #{tpu_custom_call.1} parent=1 // pred_region
      %44 = vsyncadd [#allocation6], 0
      %s45 = sshll.u32 %s3, 4
      %s46 = int_to_ptr.hbm [resolvable:$true] %s45
      %s47 = sshll.u32 [#allocation7], 4
      %s48 = int_to_ptr.vmem [resolvable:$true] %s47
      %53 = dma.hbm_to_vmem [thread:$0]  %s46, 3072, %s48, [#allocation6], 128, 128, 8
    $region17: #{tpu_custom_call.1} parent=1 // pred_fallthru
      _
    // Predicated region
    $region18: #{tpu_custom_call.1} parent=1 // pred_check
      _
    $region19: #{tpu_custom_call.1} parent=1 // pred_check_branch
      %55 = sbr.rel (0) target = $region21
    $region20: #{tpu_custom_call.1} parent=1 // pred_region
      _
    $region21: #{tpu_custom_call.1} parent=1 // pred_fallthru
      _
    // Predicated region
    $region22: #{tpu_custom_call.1} parent=1 // pred_check
      _
    $region23: #{tpu_custom_call.1} parent=1 // pred_check_branch
      %57 = sbr.rel (0) target = $region25
    $region24: #{tpu_custom_call.1} parent=1 // pred_region
      %59 = dma.done [#allocation3], 512
    $region25: #{tpu_custom_call.1} parent=1 // pred_fallthru
      _
    // Predicated region
    $region26: #{tpu_custom_call.1} parent=1 // pred_check
      _
    $region27: #{tpu_custom_call.1} parent=1 // pred_check_branch
      %61 = sbr.rel (0) target = $region29
    $region28: #{tpu_custom_call.1} parent=1 // pred_region
      %63 = dma.done [#allocation6], 3072
    $region29: #{tpu_custom_call.1} parent=1 // pred_fallthru
      _
    // Predicated region
    $region30: #{tpu_custom_call.1} parent=1 // pred_check
      _
    $region31: #{tpu_custom_call.1} parent=1 // pred_check_branch
      %65 = sbr.rel (0) target = $region33
    $region32: #{tpu_custom_call.1} parent=1 // pred_region
      %67 = dma.done [#allocation6], 3072
    $region33: #{tpu_custom_call.1} parent=1 // pred_fallthru
      _
    %v68 = vld [vmem:[#allocation2] sm:$0xff]
    %v69 = vld [vmem:[#allocation2 + $0x8] sm:$0xff]
    %v70 = vld [vmem:[#allocation2 + $0x10] sm:$0xff]
    %v71 = vld [vmem:[#allocation2 + $0x18] sm:$0xff]
    %v72 = vlaneseq
    %v73 = vshrl.u32 %v72, 7
    %v74 = vadd.s32 %v73, 8
    %v75 = vadd.s32 %v73, 16
    %v76 = vadd.s32 %v73, 24
    %vm77 = vcmp.eq.s32.totalorder %v73, 0
    %vm78 = vcmp.eq.s32.totalorder %v74, 0
    %vm79 = vcmp.eq.s32.totalorder %v75, 0
    %vm80 = vcmp.eq.s32.totalorder %v76, 0
    %vm81 = vcmp.eq.s32.totalorder %v73, 15
    %vm82 = vcmp.eq.s32.totalorder %v74, 15
    %vm83 = vcmp.eq.s32.totalorder %v75, 15
    %vm84 = vcmp.eq.s32.totalorder %v76, 15
    %vm85 = vcmp.eq.s32.totalorder %v73, 16
    %vm86 = vcmp.eq.s32.totalorder %v74, 16
    %vm87 = vcmp.eq.s32.totalorder %v75, 16
    %vm88 = vcmp.eq.s32.totalorder %v76, 16
    %vm89 = vmor %vm77, %vm85
    %vm90 = vmor %vm78, %vm86
    %vm91 = vmor %vm79, %vm87
    %vm92 = vmor %vm80, %vm88
    %vm93 = vcmp.eq.s32.totalorder %v73, 31
    %vm94 = vcmp.eq.s32.totalorder %v74, 31
    %vm95 = vcmp.eq.s32.totalorder %v75, 31
    %vm96 = vcmp.eq.s32.totalorder %v76, 31
    %vm97 = vmor %vm81, %vm93
    %vm98 = vmor %vm82, %vm94
    %vm99 = vmor %vm83, %vm95
    %vm100 = vmor %vm84, %vm96
    %vm101 = vmxor %vm89, 1
    %vm102 = vmxor %vm90, 1
    %vm103 = vmxor %vm91, 1
    %vm104 = vmxor %vm92, 1
    %vm105 = vmxor %vm97, 1
    %vm106 = vmxor %vm98, 1
    %vm107 = vmxor %vm99, 1
    %vm108 = vmxor %vm100, 1
    %v109 = vld [vmem:[%s2] sm:$0x1]
    %v111 = vperm.slane %v109, 0
    %v113 = vrot.slane %v68, 7
    %v114 = vrot.slane %v69, 7
    %v115 = vrot.slane %v70, 7
    %v116 = vrot.slane %v71, 7
    %vm117 = vcmp.lt.s32.totalorder %v73, 1
    %v118 = vsel %vm117, %v115, %v116
    %v119 = vsel %vm117, %v114, %v115
    %v120 = vsel %vm117, %v113, %v114
    %v121 = vsel %vm117, %v116, %v113
    %v122 = vsel %vm101, 1, 0
    %v123 = vsel %vm102, 1, 0
    %v124 = vsel %vm103, 1, 0
    %v125 = vsel %vm104, 1, 0
    %vm126 = vcmp.eq.s32.totalorder %v122, 1
    %vm127 = vcmp.eq.s32.totalorder %v123, 1
    %vm128 = vcmp.eq.s32.totalorder %v124, 1
    %vm129 = vcmp.eq.s32.totalorder %v125, 1
    %v130 = vsel %vm126, %v121, 0.0
    %v131 = vsel %vm127, %v120, 0.0
    %v132 = vsel %vm128, %v119, 0.0
    %v133 = vsel %vm129, %v118, 0.0
    %v134 = vld [vmem:[#allocation5] sm:$0xff]
    %v135 = vld [vmem:[#allocation5 + $0x8] sm:$0xff]
    %v136 = vld [vmem:[#allocation5 + $0x10] sm:$0xff]
    %v137 = vld [vmem:[#allocation5 + $0x18] sm:$0xff]
    %v138 = vld [vmem:[#allocation5 + $0x20] sm:$0xff]
    %v139 = vld [vmem:[#allocation5 + $0x28] sm:$0xff]
    %v140 = vld [vmem:[#allocation5 + $0x30] sm:$0xff]
    %v141 = vld [vmem:[#allocation5 + $0x38] sm:$0xff]
    %vm142 = vcmask 523264
    %v144 = vsel %vm142, %v130, 0
    %v147 = vsel %vm142, %v131, 0
    %v150 = vsel %vm142, %v132, 0
    %v153 = vsel %vm142, %v133, 0
    %155 = vmatpush.msra.mxu0 0.0
    %156 = vmatpush.msra.mxu0 0.0
    %157 = vmatpush.msra.mxu0 0.0
    %158 = vmatpush.msra.mxu0 0.0
    %159 = vmatpush.msra.mxu0 0.0
    %160 = vmatpush.msra.mxu0 0.0
    %161 = vmatpush.msra.mxu0 0.0
    %162 = vmatpush.msra.mxu0 0.0
    %163 = vmatpush.msra.mxu0 %v141
    %164 = vmatpush.msra.mxu0 %v140
    %165 = vmatpush.msra.mxu0 %v139
    %166 = vmatpush.msra.mxu0 %v138
    %167 = vmatpush.msra.mxu0 %v137
    %168 = vmatpush.msra.mxu0 %v136
    %169 = vmatpush.msra.mxu0 %v135
    %170 = vmatpush.msra.mxu0 %v134
    %171 = vmatmul.f32.gmra.mxu0 %v144
    %v172 = vpop.f32.mrf.mxu0
    %v173 = vadd.f32 0.0, %v172
    %174 = vmatmul.f32.gmra.mxu0 %v147
    %v175 = vpop.f32.mrf.mxu0
    %v176 = vadd.f32 0.0, %v175
    %177 = vmatmul.f32.gmra.mxu0 %v150
    %v178 = vpop.f32.mrf.mxu0
    %v179 = vadd.f32 0.0, %v178
    %180 = vmatmul.f32.gmra.mxu0 %v153
    %v181 = vpop.f32.mrf.mxu0
    %v182 = vadd.f32 0.0, %v181
    %183 = vdwg.mxu0
    %v184 = vadd.f32 %v111, %v173
    %v185 = vadd.f32 %v111, %v176
    %v186 = vadd.f32 %v111, %v179
    %v187 = vadd.f32 %v111, %v182
    %s188 = scalar_lea.vmem [#allocation5], 64
    %v189 = vld [vmem:[%s188] sm:$0xff]
    %v190 = vld [vmem:[%s188 + $0x8] sm:$0xff]
    %v191 = vld [vmem:[%s188 + $0x10] sm:$0xff]
    %v192 = vld [vmem:[%s188 + $0x18] sm:$0xff]
    %v193 = vld [vmem:[%s188 + $0x20] sm:$0xff]
    %v194 = vld [vmem:[%s188 + $0x28] sm:$0xff]
    %v195 = vld [vmem:[%s188 + $0x30] sm:$0xff]
    %v196 = vld [vmem:[%s188 + $0x38] sm:$0xff]
    %v198 = vsel %vm142, %v68, 0
    %v201 = vsel %vm142, %v69, 0
    %v204 = vsel %vm142, %v70, 0
    %v207 = vsel %vm142, %v71, 0
    %209 = vmatpush.msra.mxu0 0.0
    %210 = vmatpush.msra.mxu0 0.0
    %211 = vmatpush.msra.mxu0 0.0
    %212 = vmatpush.msra.mxu0 0.0
    %213 = vmatpush.msra.mxu0 0.0
    %214 = vmatpush.msra.mxu0 0.0
    %215 = vmatpush.msra.mxu0 0.0
    %216 = vmatpush.msra.mxu0 0.0
    %217 = vmatpush.msra.mxu0 %v196
    %218 = vmatpush.msra.mxu0 %v195
    %219 = vmatpush.msra.mxu0 %v194
    %220 = vmatpush.msra.mxu0 %v193
    %221 = vmatpush.msra.mxu0 %v192
    %222 = vmatpush.msra.mxu0 %v191
    %223 = vmatpush.msra.mxu0 %v190
    %224 = vmatpush.msra.mxu0 %v189
    %225 = vmatmul.f32.gmra.mxu0 %v198
    %v226 = vpop.f32.mrf.mxu0
    %v227 = vadd.f32 0.0, %v226
    %228 = vmatmul.f32.gmra.mxu0 %v201
    %v229 = vpop.f32.mrf.mxu0
    %v230 = vadd.f32 0.0, %v229
    %231 = vmatmul.f32.gmra.mxu0 %v204
    %v232 = vpop.f32.mrf.mxu0
    %v233 = vadd.f32 0.0, %v232
    %234 = vmatmul.f32.gmra.mxu0 %v207
    %v235 = vpop.f32.mrf.mxu0
    %v236 = vadd.f32 0.0, %v235
    %237 = vdwg.mxu0
    %v238 = vadd.f32 %v184, %v227
    %v239 = vadd.f32 %v185, %v230
    %v240 = vadd.f32 %v186, %v233
    %v241 = vadd.f32 %v187, %v236
    %v242 = vrot.slane %v68, 1
    %v243 = vrot.slane %v69, 1
    %v244 = vrot.slane %v70, 1
    %v245 = vrot.slane %v71, 1
    %vm246 = vcmp.lt.s32.totalorder %v73, 7
    %v247 = vsel %vm246, %v244, %v245
    %v248 = vsel %vm246, %v243, %v244
    %v249 = vsel %vm246, %v242, %v243
    %v250 = vsel %vm246, %v245, %v242
    %v251 = vsel %vm105, 1, 0
    %v252 = vsel %vm106, 1, 0
    %v253 = vsel %vm107, 1, 0
    %v254 = vsel %vm108, 1, 0
    %vm255 = vcmp.eq.s32.totalorder %v251, 1
    %vm256 = vcmp.eq.s32.totalorder %v252, 1
    %vm257 = vcmp.eq.s32.totalorder %v253, 1
    %vm258 = vcmp.eq.s32.totalorder %v254, 1
    %v259 = vsel %vm255, %v249, 0.0
    %v260 = vsel %vm256, %v248, 0.0
    %v261 = vsel %vm257, %v247, 0.0
    %v262 = vsel %vm258, %v250, 0.0
    %s263 = scalar_lea.vmem [#allocation5], 128
    %v264 = vld [vmem:[%s263] sm:$0xff]
    %v265 = vld [vmem:[%s263 + $0x8] sm:$0xff]
    %v266 = vld [vmem:[%s263 + $0x10] sm:$0xff]
    %v267 = vld [vmem:[%s263 + $0x18] sm:$0xff]
    %v268 = vld [vmem:[%s263 + $0x20] sm:$0xff]
    %v269 = vld [vmem:[%s263 + $0x28] sm:$0xff]
    %v270 = vld [vmem:[%s263 + $0x30] sm:$0xff]
    %v271 = vld [vmem:[%s263 + $0x38] sm:$0xff]
    %v273 = vsel %vm142, %v259, 0
    %v276 = vsel %vm142, %v260, 0
    %v279 = vsel %vm142, %v261, 0
    %v282 = vsel %vm142, %v262, 0
    %284 = vmatpush.msra.mxu0 0.0
    %285 = vmatpush.msra.mxu0 0.0
    %286 = vmatpush.msra.mxu0 0.0
    %287 = vmatpush.msra.mxu0 0.0
    %288 = vmatpush.msra.mxu0 0.0
    %289 = vmatpush.msra.mxu0 0.0
    %290 = vmatpush.msra.mxu0 0.0
    %291 = vmatpush.msra.mxu0 0.0
    %292 = vmatpush.msra.mxu0 %v271
    %293 = vmatpush.msra.mxu0 %v270
    %294 = vmatpush.msra.mxu0 %v269
    %295 = vmatpush.msra.mxu0 %v268
    %296 = vmatpush.msra.mxu0 %v267
    %297 = vmatpush.msra.mxu0 %v266
    %298 = vmatpush.msra.mxu0 %v265
    %299 = vmatpush.msra.mxu0 %v264
    %300 = vmatmul.f32.gmra.mxu0 %v273
    %v301 = vpop.f32.mrf.mxu0
    %v302 = vadd.f32 0.0, %v301
    %303 = vmatmul.f32.gmra.mxu0 %v276
    %v304 = vpop.f32.mrf.mxu0
    %v305 = vadd.f32 0.0, %v304
    %306 = vmatmul.f32.gmra.mxu0 %v279
    %v307 = vpop.f32.mrf.mxu0
    %v308 = vadd.f32 0.0, %v307
    %309 = vmatmul.f32.gmra.mxu0 %v282
    %v310 = vpop.f32.mrf.mxu0
    %v311 = vadd.f32 0.0, %v310
    %312 = vdwg.mxu0
    %v313 = vadd.f32 %v238, %v302
    %v314 = vadd.f32 %v239, %v305
    %v315 = vadd.f32 %v240, %v308
    %v316 = vadd.f32 %v241, %v311
    %v317 = vmax.f32 %v313, 0.0
    %v318 = vmax.f32 %v314, 0.0
    %v319 = vmax.f32 %v315, 0.0
    %v320 = vmax.f32 %v316, 0.0
    %v321 = vld [vmem:[%s4] sm:$0x1]
    %v323 = vperm.slane %v321, 0
    %v325 = vrot.slane %v317, 7
    %v326 = vrot.slane %v318, 7
    %v327 = vrot.slane %v319, 7
    %v328 = vrot.slane %v320, 7
    %v329 = vsel %vm117, %v327, %v328
    %v330 = vsel %vm117, %v326, %v327
    %v331 = vsel %vm117, %v325, %v326
    %v332 = vsel %vm117, %v328, %v325
    %v333 = vsel %vm126, %v332, 0.0
    %v334 = vsel %vm127, %v331, 0.0
    %v335 = vsel %vm128, %v330, 0.0
    %v336 = vsel %vm129, %v329, 0.0
    %v337 = vld [vmem:[#allocation7] sm:$0xff]
    %v338 = vld [vmem:[#allocation7 + $0x8] sm:$0xff]
    %v339 = vld [vmem:[#allocation7 + $0x10] sm:$0xff]
    %v340 = vld [vmem:[#allocation7 + $0x18] sm:$0xff]
    %v341 = vld [vmem:[#allocation7 + $0x20] sm:$0xff]
    %v342 = vld [vmem:[#allocation7 + $0x28] sm:$0xff]
    %v343 = vld [vmem:[#allocation7 + $0x30] sm:$0xff]
    %v344 = vld [vmem:[#allocation7 + $0x38] sm:$0xff]
    %v346 = vsel %vm142, %v333, 0
    %v349 = vsel %vm142, %v334, 0
    %v352 = vsel %vm142, %v335, 0
    %v355 = vsel %vm142, %v336, 0
    %357 = vmatpush.msra.mxu0 0.0
    %358 = vmatpush.msra.mxu0 0.0
    %359 = vmatpush.msra.mxu0 0.0
    %360 = vmatpush.msra.mxu0 0.0
    %361 = vmatpush.msra.mxu0 0.0
    %362 = vmatpush.msra.mxu0 0.0
    %363 = vmatpush.msra.mxu0 0.0
    %364 = vmatpush.msra.mxu0 0.0
    %365 = vmatpush.msra.mxu0 %v344
    %366 = vmatpush.msra.mxu0 %v343
    %367 = vmatpush.msra.mxu0 %v342
    %368 = vmatpush.msra.mxu0 %v341
    %369 = vmatpush.msra.mxu0 %v340
    %370 = vmatpush.msra.mxu0 %v339
    %371 = vmatpush.msra.mxu0 %v338
    %372 = vmatpush.msra.mxu0 %v337
    %373 = vmatmul.f32.gmra.mxu0 %v346
    %v374 = vpop.f32.mrf.mxu0
    %v375 = vadd.f32 0.0, %v374
    %376 = vmatmul.f32.gmra.mxu0 %v349
    %v377 = vpop.f32.mrf.mxu0
    %v378 = vadd.f32 0.0, %v377
    %379 = vmatmul.f32.gmra.mxu0 %v352
    %v380 = vpop.f32.mrf.mxu0
    %v381 = vadd.f32 0.0, %v380
    %382 = vmatmul.f32.gmra.mxu0 %v355
    %v383 = vpop.f32.mrf.mxu0
    %v384 = vadd.f32 0.0, %v383
    %385 = vdwg.mxu0
    %v386 = vadd.f32 %v323, %v375
    %v387 = vadd.f32 %v323, %v378
    %v388 = vadd.f32 %v323, %v381
    %v389 = vadd.f32 %v323, %v384
    %s390 = scalar_lea.vmem [#allocation7], 64
    %v391 = vld [vmem:[%s390] sm:$0xff]
    %v392 = vld [vmem:[%s390 + $0x8] sm:$0xff]
    %v393 = vld [vmem:[%s390 + $0x10] sm:$0xff]
    %v394 = vld [vmem:[%s390 + $0x18] sm:$0xff]
    %v395 = vld [vmem:[%s390 + $0x20] sm:$0xff]
    %v396 = vld [vmem:[%s390 + $0x28] sm:$0xff]
    %v397 = vld [vmem:[%s390 + $0x30] sm:$0xff]
    %v398 = vld [vmem:[%s390 + $0x38] sm:$0xff]
    %v400 = vsel %vm142, %v317, 0
    %v403 = vsel %vm142, %v318, 0
    %v406 = vsel %vm142, %v319, 0
    %v409 = vsel %vm142, %v320, 0
    %411 = vmatpush.msra.mxu0 0.0
    %412 = vmatpush.msra.mxu0 0.0
    %413 = vmatpush.msra.mxu0 0.0
    %414 = vmatpush.msra.mxu0 0.0
    %415 = vmatpush.msra.mxu0 0.0
    %416 = vmatpush.msra.mxu0 0.0
    %417 = vmatpush.msra.mxu0 0.0
    %418 = vmatpush.msra.mxu0 0.0
    %419 = vmatpush.msra.mxu0 %v398
    %420 = vmatpush.msra.mxu0 %v397
    %421 = vmatpush.msra.mxu0 %v396
    %422 = vmatpush.msra.mxu0 %v395
    %423 = vmatpush.msra.mxu0 %v394
    %424 = vmatpush.msra.mxu0 %v393
    %425 = vmatpush.msra.mxu0 %v392
    %426 = vmatpush.msra.mxu0 %v391
    %427 = vmatmul.f32.gmra.mxu0 %v400
    %v428 = vpop.f32.mrf.mxu0
    %v429 = vadd.f32 0.0, %v428
    %430 = vmatmul.f32.gmra.mxu0 %v403
    %v431 = vpop.f32.mrf.mxu0
    %v432 = vadd.f32 0.0, %v431
    %433 = vmatmul.f32.gmra.mxu0 %v406
    %v434 = vpop.f32.mrf.mxu0
    %v435 = vadd.f32 0.0, %v434
    %436 = vmatmul.f32.gmra.mxu0 %v409
    %v437 = vpop.f32.mrf.mxu0
    %v438 = vadd.f32 0.0, %v437
    %439 = vdwg.mxu0
    %v440 = vadd.f32 %v386, %v429
    %v441 = vadd.f32 %v387, %v432
    %v442 = vadd.f32 %v388, %v435
    %v443 = vadd.f32 %v389, %v438
    %v444 = vrot.slane %v317, 1
    %v445 = vrot.slane %v318, 1
    %v446 = vrot.slane %v319, 1
    %v447 = vrot.slane %v320, 1
    %v448 = vsel %vm246, %v446, %v447
    %v449 = vsel %vm246, %v445, %v446
    %v450 = vsel %vm246, %v444, %v445
    %v451 = vsel %vm246, %v447, %v444
    %v452 = vsel %vm255, %v450, 0.0
    %v453 = vsel %vm256, %v449, 0.0
    %v454 = vsel %vm257, %v448, 0.0
    %v455 = vsel %vm258, %v451, 0.0
    %s456 = scalar_lea.vmem [#allocation7], 128
    %v457 = vld [vmem:[%s456] sm:$0xff]
    %v458 = vld [vmem:[%s456 + $0x8] sm:$0xff]
    %v459 = vld [vmem:[%s456 + $0x10] sm:$0xff]
    %v460 = vld [vmem:[%s456 + $0x18] sm:$0xff]
    %v461 = vld [vmem:[%s456 + $0x20] sm:$0xff]
    %v462 = vld [vmem:[%s456 + $0x28] sm:$0xff]
    %v463 = vld [vmem:[%s456 + $0x30] sm:$0xff]
    %v464 = vld [vmem:[%s456 + $0x38] sm:$0xff]
    %v466 = vsel %vm142, %v452, 0
    %v469 = vsel %vm142, %v453, 0
    %v472 = vsel %vm142, %v454, 0
    %v475 = vsel %vm142, %v455, 0
    %477 = vmatpush.msra.mxu0 0.0
    %478 = vmatpush.msra.mxu0 0.0
    %479 = vmatpush.msra.mxu0 0.0
    %480 = vmatpush.msra.mxu0 0.0
    %481 = vmatpush.msra.mxu0 0.0
    %482 = vmatpush.msra.mxu0 0.0
    %483 = vmatpush.msra.mxu0 0.0
    %484 = vmatpush.msra.mxu0 0.0
    %485 = vmatpush.msra.mxu0 %v464
    %486 = vmatpush.msra.mxu0 %v463
    %487 = vmatpush.msra.mxu0 %v462
    %488 = vmatpush.msra.mxu0 %v461
    %489 = vmatpush.msra.mxu0 %v460
    %490 = vmatpush.msra.mxu0 %v459
    %491 = vmatpush.msra.mxu0 %v458
    %492 = vmatpush.msra.mxu0 %v457
    %493 = vmatmul.f32.gmra.mxu0 %v466
    %v494 = vpop.f32.mrf.mxu0
    %v495 = vadd.f32 0.0, %v494
    %496 = vmatmul.f32.gmra.mxu0 %v469
    %v497 = vpop.f32.mrf.mxu0
    %v498 = vadd.f32 0.0, %v497
    %499 = vmatmul.f32.gmra.mxu0 %v472
    %v500 = vpop.f32.mrf.mxu0
    %v501 = vadd.f32 0.0, %v500
    %502 = vmatmul.f32.gmra.mxu0 %v475
    %v503 = vpop.f32.mrf.mxu0
    %v504 = vadd.f32 0.0, %v503
    %505 = vdwg.mxu0
    %v506 = vadd.f32 %v440, %v495
    %v507 = vadd.f32 %v441, %v498
    %v508 = vadd.f32 %v442, %v501
    %v509 = vadd.f32 %v443, %v504
    %v510 = vadd.f32 %v506, %v68
    %v511 = vadd.f32 %v507, %v69
    %v512 = vadd.f32 %v508, %v70
    %v513 = vadd.f32 %v509, %v71
    %v514 = vmax.f32 %v510, 0.0
    %v515 = vmax.f32 %v511, 0.0
    %v516 = vmax.f32 %v512, 0.0
    %v517 = vmax.f32 %v513, 0.0
    %518 = vst.msk [vmem:[#allocation8] sm:$0xff] %vm142, %v514
    %519 = vst.msk [vmem:[#allocation8 + $0x8] sm:$0xff] %vm142, %v515
    %520 = vst.msk [vmem:[#allocation8 + $0x10] sm:$0xff] %vm142, %v516
    %521 = vst.msk [vmem:[#allocation8 + $0x18] sm:$0xff] %vm142, %v517
    // Predicated region
    $region34: #{tpu_custom_call.1} parent=1 // pred_check
      _
    $region35: #{tpu_custom_call.1} parent=1 // pred_check_branch
      %523 = sbr.rel (0) target = $region37
    $region36: #{tpu_custom_call.1} parent=1 // pred_region
      %525 = vsyncadd [#allocation4], 0
      %s526 = sshll.u32 [#allocation8], 4
      %s527 = int_to_ptr.vmem [resolvable:$true] %s526
      %s528 = sshll.u32 %s5, 4
      %s529 = int_to_ptr.hbm [resolvable:$true] %s528
      %534 = dma.vmem_to_hbm [thread:$0]  %s527, 512, %s529, [#allocation4], 128, 128, 8
    $region37: #{tpu_custom_call.1} parent=1 // pred_fallthru
      _
    // Predicated region
    $region38: #{tpu_custom_call.1} parent=1 // pred_check
      _
    $region39: #{tpu_custom_call.1} parent=1 // pred_check_branch
      %536 = sbr.rel (0) target = $region41
    $region40: #{tpu_custom_call.1} parent=1 // pred_region
      %538 = dma.done [#allocation4], 512
    $region41: #{tpu_custom_call.1} parent=1 // pred_fallthru
      _
    %539 = vsyncpa [#allocation3], 1
    %540 = vsyncpa [#allocation6], 1
    %541 = vsyncpa [#allocation4], 1

</llo_original>
